<compile_context>
chip_gen: v6e
topology: v6e:2x2x1
jax: 0.10.0
libtpu: 0.0.40
codegen_flags: <defaults>
</compile_context>

<pallas_src>
import functools

import jax
import jax.numpy as jnp
from jax import lax
from jax.experimental import pallas as pl
from jax.experimental.pallas import tpu as pltpu

LN_EPS = 1e-6  # TODO(synk): must match layer_norm_eps of the real HF config for parity.


# --------------------------- Pallas kernels ---------------------------------

def _patch_embed_kernel(p_ref, w_ref, b_ref, o_ref):
    # Conv2d(kernel=P, stride=P) expressed as one bf16 MXU matmul per row tile.
    acc = jnp.dot(p_ref[...], w_ref[...], preferred_element_type=jnp.float32)
    o_ref[...] = (acc + b_ref[...]).astype(o_ref.dtype)


def _layernorm(x, g, b, eps):
    mean = jnp.mean(x, axis=-1, keepdims=True)
    var = jnp.mean(jnp.square(x - mean), axis=-1, keepdims=True)
    return (x - mean) * lax.rsqrt(var + eps) * g + b


def _encoder_kernel(h0_ref,
                    ln1g_ref, ln1b_ref, wqkv_ref, bqkv_ref, wo_ref, bo_ref,
                    ln2g_ref, ln2b_ref, w1_ref, b1_ref, w2_ref, b2_ref,
                    lnfg_ref, lnfb_ref, wproj_ref,
                    out_ref, h_scr,
                    *, n_heads, eps, seq_len):
    """One (batch row, layer) grid step of the whole pre-LN ViT encoder.

    h is carried in a fp32 VMEM scratch across the layer axis (no HBM
    round-trips for activations); weights stream per layer step.
    """
    l = pl.program_id(1)
    n_layers = pl.num_programs(1)
    S, D = h_scr.shape
    hd = D // n_heads

    @pl.when(l == 0)
    def _():
        h_scr[...] = h0_ref[0].astype(jnp.float32)

    x = h_scr[...]                                          # [S, D] fp32 residual

    # ---- LN1 + fused QKV projection (1/sqrt(hd) pre-folded into Q columns) ----
    xn = _layernorm(x, ln1g_ref[0], ln1b_ref[0], eps)
    qkv = (jnp.dot(xn.astype(jnp.bfloat16), wqkv_ref[0],
                   preferred_element_type=jnp.float32)
           + bqkv_ref[0]).astype(jnp.bfloat16)              # [S, 3D], stays in VMEM

    # ---- multi-head self attention ----
    if seq_len < S:   # padded key columns -> -inf before softmax
        key_mask = jnp.where(
            lax.broadcasted_iota(jnp.int32, (S, S), 1) < seq_len,
            0.0, -1e30).astype(jnp.float32)
    else:
        key_mask = None
    # TODO(synk): per-head lane slicing + concat is XLU-heavy; a batched
    # [nh,S,hd] einsum would need a (1,0,2) relayout whose Mosaic lowering is
    # not guaranteed, so the proven static head loop is kept.
    head_outs = []
    for hh in range(n_heads):
        qh = qkv[:, hh * hd:(hh + 1) * hd]
        kh = qkv[:, D + hh * hd:D + (hh + 1) * hd]
        vh = qkv[:, 2 * D + hh * hd:2 * D + (hh + 1) * hd]
        s = lax.dot_general(qh, kh, (((1,), (1,)), ((), ())),
                            preferred_element_type=jnp.float32)
        if key_mask is not None:
            s = s + key_mask
        s = s - jnp.max(s, axis=-1, keepdims=True)
        p = jnp.exp(s)
        p = p * pl.reciprocal(jnp.sum(p, axis=-1, keepdims=True), approx=True)
        head_outs.append(jnp.dot(p.astype(jnp.bfloat16), vh,
                                 preferred_element_type=jnp.float32))
    a = jnp.concatenate(head_outs, axis=-1).astype(jnp.bfloat16)    # [S, D]

    # ---- output projection + residual (full-width MXU dot) ----
    x = x + jnp.dot(a, wo_ref[0], preferred_element_type=jnp.float32) + bo_ref[0]

    # ---- LN2 + MLP (tanh GELU -> EUP) + residual ----
    xn2 = _layernorm(x, ln2g_ref[0], ln2b_ref[0], eps)
    m1 = jnp.dot(xn2.astype(jnp.bfloat16), w1_ref[0],
                 preferred_element_type=jnp.float32) + b1_ref[0]
    m1 = jax.nn.gelu(m1, approximate=True)
    m2 = jnp.dot(m1.astype(jnp.bfloat16), w2_ref[0],
                 preferred_element_type=jnp.float32) + b2_ref[0]
    h_new = x + m2
    h_scr[...] = h_new

    # ---- final LayerNorm + linear proj (bias=False) on the CLS row only ----
    @pl.when(l == n_layers - 1)
    def _():
        cls = h_new[0:1, :]                                 # pool_type='tok'
        cn = _layernorm(cls, lnfg_ref[...], lnfb_ref[...], eps)
        out_ref[0] = jnp.dot(cn.astype(jnp.bfloat16), wproj_ref[...],
                             preferred_element_type=jnp.float32
                             ).astype(out_ref.dtype)


# --------------------------- pallas_call wrappers ----------------------------

def patch_embed(patches, w, b):
    M, K = patches.shape
    D = w.shape[1]
    tm = M if M <= 512 else 512
    return pl.pallas_call(
        _patch_embed_kernel,
        grid=(pl.cdiv(M, tm),),
        in_specs=[
            pl.BlockSpec((tm, K), lambda i: (i, 0)),
            pl.BlockSpec((K, D), lambda i: (0, 0)),
            pl.BlockSpec((1, D), lambda i: (0, 0)),
        ],
        out_specs=pl.BlockSpec((tm, D), lambda i: (i, 0)),
        out_shape=jax.ShapeDtypeStruct((M, D), jnp.float32),
        compiler_params=pltpu.CompilerParams(dimension_semantics=("parallel",)),
    )(patches, w, b.reshape(1, D))


def encoder_transformer(params, h0, *, seq_len):
    """All transformer layers + final LN + 'tok' pool + projection, one call."""
    B, S_pad, D = h0.shape
    L, _, D3 = params["wqkv"].shape
    Hd = params["w1"].shape[2]
    N = params["w_proj"].shape[1]
    nh = params["n_heads"]

    # VMEM budget: double-buffered bf16 layer weights + fp32 biases/LN + headroom,
    # capped below v7x's 64 MiB physical per-core VMEM.
    layer_bytes = 2 * (D * D3 + D * D + D * Hd + Hd * D) + 4 * (6 * D + D3 + Hd)
    vmem_limit = int(min(56 * 1024 * 1024,
                         max(16 * 1024 * 1024, 2 * layer_bytes + 8 * 1024 * 1024)))

    out = pl.pallas_call(
        functools.partial(_encoder_kernel, n_heads=nh, eps=LN_EPS, seq_len=seq_len),
        grid=(B, L),
        in_specs=[
            pl.BlockSpec((1, S_pad, D), lambda b, l: (b, 0, 0)),   # h0 (DMA once per b)
            pl.BlockSpec((1, 1, D),  lambda b, l: (l, 0, 0)),      # ln1_g
            pl.BlockSpec((1, 1, D),  lambda b, l: (l, 0, 0)),      # ln1_b
            pl.BlockSpec((1, D, D3), lambda b, l: (l, 0, 0)),      # wqkv
            pl.BlockSpec((1, 1, D3), lambda b, l: (l, 0, 0)),      # bqkv
            pl.BlockSpec((1, D, D),  lambda b, l: (l, 0, 0)),      # wo
            pl.BlockSpec((1, 1, D),  lambda b, l: (l, 0, 0)),      # bo
            pl.BlockSpec((1, 1, D),  lambda b, l: (l, 0, 0)),      # ln2_g
            pl.BlockSpec((1, 1, D),  lambda b, l: (l, 0, 0)),      # ln2_b
            pl.BlockSpec((1, D, Hd), lambda b, l: (l, 0, 0)),      # w1
            pl.BlockSpec((1, 1, Hd), lambda b, l: (l, 0, 0)),      # b1
            pl.BlockSpec((1, Hd, D), lambda b, l: (l, 0, 0)),      # w2
            pl.BlockSpec((1, 1, D),  lambda b, l: (l, 0, 0)),      # b2
            pl.BlockSpec((1, D), lambda b, l: (0, 0)),             # lnf_g
            pl.BlockSpec((1, D), lambda b, l: (0, 0)),             # lnf_b
            pl.BlockSpec((D, N), lambda b, l: (0, 0)),             # w_proj
        ],
        out_specs=pl.BlockSpec((1, 1, N), lambda b, l: (b, 0, 0)),
        out_shape=jax.ShapeDtypeStruct((B, 1, N), jnp.float32),
        scratch_shapes=[pltpu.VMEM((S_pad, D), jnp.float32)],      # residual stream
        compiler_params=pltpu.CompilerParams(
            dimension_semantics=("parallel", "arbitrary"),
            vmem_limit_bytes=vmem_limit),
    )(h0,
      params["ln1_g"], params["ln1_b"], params["wqkv"], params["bqkv"],
      params["wo"], params["bo"], params["ln2_g"], params["ln2_b"],
      params["w1"], params["b1"], params["w2"], params["b2"],
      params["lnf_g"], params["lnf_b"], params["w_proj"])
    return out[:, 0, :]


# --------------------------- Parameter init ---------------------------------

def init_params(key, *, in_chans, patch_size, d_model, n_layers, n_heads,
                mlp_hidden, n_patches, output_dim):
    std = 0.02
    D, L, Hd = d_model, n_layers, mlp_hidden
    hd = d_model // n_heads
    k = jax.random.split(key, 13)

    def nrm(kk, shape, dtype=jnp.float32):
        return (std * jax.random.normal(kk, shape, jnp.float32)).astype(dtype)

    patch_dim = in_chans * patch_size * patch_size
    # Fold the attention scale 1/sqrt(head_dim) into the Q columns of the fused
    # QKV weight/bias (zero runtime cost; mathematically identical).
    qkv_scale = jnp.concatenate([jnp.full((D,), 1.0 / float(hd) ** 0.5),
                                 jnp.ones((2 * D,))]).astype(jnp.float32)
    wqkv = nrm(k[5], (L, D, 3 * D)) * qkv_scale
    bqkv = nrm(k[6], (L, 1, 3 * D)) * qkv_scale

    return {
        "patch_size": patch_size,
        "n_heads": n_heads,
        # matmul weights in bf16 (MXU-native, half the HBM bytes); LN params,
        # biases and the residual stream stay fp32.
        "w_patch": nrm(k[0], (patch_dim, D), jnp.bfloat16),
        "b_patch": nrm(k[1], (D,)),
        "cls_token": nrm(k[2], (1, D)),
        "pos_emb": nrm(k[3], (n_patches + 1, D)),
        "ln1_g": jnp.ones((L, 1, D), jnp.float32),
        "ln1_b": jnp.zeros((L, 1, D), jnp.float32),
        "wqkv": wqkv.astype(jnp.bfloat16),
        "bqkv": bqkv,
        "wo": nrm(k[7], (L, D, D), jnp.bfloat16),
        "bo": nrm(k[8], (L, 1, D)),
        "ln2_g": jnp.ones((L, 1, D), jnp.float32),
        "ln2_b": jnp.zeros((L, 1, D), jnp.float32),
        "w1": nrm(k[9], (L, D, Hd), jnp.bfloat16),
        "b1": nrm(k[10], (L, 1, Hd)),
        "w2": nrm(k[11], (L, Hd, D), jnp.bfloat16),
        "b2": nrm(k[12], (L, 1, D)),
        "lnf_g": jnp.ones((1, D), jnp.float32),
        "lnf_b": jnp.zeros((1, D), jnp.float32),
        "w_proj": nrm(k[4], (D, output_dim), jnp.bfloat16),   # proj_bias=False
    }


# --------------------------- Forward (HFVisionEncoder.forward) --------------

def hf_vision_encoder_forward(params, x):
    """x: NCHW [B, C, H, W] -> projected [B, output_dim] (pool_type='tok')."""
    B, C, H, W = x.shape
    P = params["patch_size"]
    gh, gw = H // P, W // P
    n_patches = gh * gw

    # Patch extraction (== Conv2d(kernel=P, stride=P) on NCHW); patches fed bf16.
    patches = (x.reshape(B, C, gh, P, gw, P)
                .transpose(0, 2, 4, 1, 3, 5)
                .reshape(B * n_patches, C * P * P)).astype(jnp.bfloat16)
    emb = patch_embed(patches, params["w_patch"], params["b_patch"])
    D = emb.shape[-1]
    emb = emb.reshape(B, n_patches, D)

    cls = jnp.broadcast_to(params["cls_token"][None], (B, 1, D))
    h = jnp.concatenate([cls, emb], axis=1) + params["pos_emb"][None]   # [B,S,D]

    # Pad the token axis to a sublane multiple; padded keys masked in-kernel.
    S = n_patches + 1
    S_pad = -(-S // 8) * 8
    if S_pad != S:
        h = jnp.pad(h, ((0, 0), (0, S_pad - S), (0, 0)))

    # Whole encoder (all layers + final LN + 'tok' pool + proj) in one kernel.
    return encoder_transformer(params, h, seq_len=S)


# --------------------------- Main --------------------------------------------

if __name__ == "__main__":
    key = jax.random.PRNGKey(0)
    k_img, k_par = jax.random.split(key)

    B, C, IMG, PATCH = 2, 4, 16, 8
    D_MODEL, N_LAYERS, N_HEADS, MLP_HIDDEN, OUT_DIM = 128, 2, 4, 256, 64
    n_patches = (IMG // PATCH) ** 2

    x = jax.random.normal(k_img, (B, C, IMG, IMG), dtype=jnp.float32)  # NCHW
    params = init_params(
        k_par, in_chans=C, patch_size=PATCH, d_model=D_MODEL,
        n_layers=N_LAYERS, n_heads=N_HEADS, mlp_hidden=MLP_HIDDEN,
        n_patches=n_patches, output_dim=OUT_DIM)

    out = hf_vision_encoder_forward(params, x)
    out = jax.block_until_ready(out)
    assert out.shape == (B, OUT_DIM), out.shape
    print("KERNEL_OK")
</pallas_src>

<mosaic_0001>
module attributes {stable_mosaic.version = 11 : i64} {
  func.func @_patch_embed_kernel(%arg0: i32, %arg1: memref<8x256xbf16, #tpu.memory_space<vmem>>, %arg2: memref<256x128xbf16, #tpu.memory_space<vmem>>, %arg3: memref<1x128xf32, #tpu.memory_space<vmem>>, %arg4: memref<8x128xf32, #tpu.memory_space<vmem>>) attributes {dimension_semantics = [#tpu.dimension_semantics<parallel>], iteration_bounds = array<i64: 1>, scalar_prefetch = 0 : i64, scratch_operands = 0 : i64, tpu.core_type = #tpu.core_type<tc>, window_params = [{transform_indices = @transform_0, window_bounds = array<i64: 8, 256>}, {pipeline_mode = #tpu.pipeline_mode<synchronous>, transform_indices = @transform_1, window_bounds = array<i64: 256, 128>}, {pipeline_mode = #tpu.pipeline_mode<synchronous>, transform_indices = @transform_2, window_bounds = array<i64: 1, 128>}, {transform_indices = @transform_3, window_bounds = array<i64: 8, 128>}]} {
    %c0 = arith.constant 0 : index
    %c0_0 = arith.constant 0 : index
    %0 = vector.load %arg1[%c0, %c0_0] : memref<8x256xbf16, #tpu.memory_space<vmem>>, vector<8x256xbf16>
    %c0_1 = arith.constant 0 : index
    %c0_2 = arith.constant 0 : index
    %1 = vector.load %arg2[%c0_1, %c0_2] : memref<256x128xbf16, #tpu.memory_space<vmem>>, vector<256x128xbf16>
    %cst = arith.constant dense<0.000000e+00> : vector<8x128xf32>
    %2 = tpu.matmul %0, %1, %cst {dimension_numbers = #tpu.dot_dimension_numbers<[1], [0], [0], [1], [0, 0, 1, 1], [], []>} : vector<8x256xbf16>, vector<256x128xbf16>, vector<8x128xf32> -> vector<8x128xf32>
    %c0_3 = arith.constant 0 : index
    %c0_4 = arith.constant 0 : index
    %3 = vector.load %arg3[%c0_3, %c0_4] : memref<1x128xf32, #tpu.memory_space<vmem>>, vector<1x128xf32>
    %4 = vector.broadcast %3 : vector<1x128xf32> to vector<8x128xf32>
    %5 = arith.addf %2, %4 : vector<8x128xf32>
    %c0_5 = arith.constant 0 : index
    %c0_6 = arith.constant 0 : index
    %6 = vector.load %arg4[%c0_5, %c0_6] : memref<8x128xf32, #tpu.memory_space<vmem>>, vector<8x128xf32>
    tpu.vector_store %arg4[%c0_5, %c0_6], %5 {strides = array<i32>} : memref<8x128xf32, #tpu.memory_space<vmem>>, vector<8x128xf32>,
    return
  }
  func.func @transform_0(%arg0: i32) -> (i32, i32) {
    %c0_i32 = arith.constant 0 : i32
    %c0_i32_0 = arith.constant 0 : i32
    return %arg0, %c0_i32 : i32, i32
  }
  func.func @transform_1(%arg0: i32) -> (i32, i32) {
    %c0_i32 = arith.constant 0 : i32
    %c0_i32_0 = arith.constant 0 : i32
    %c0_i32_1 = arith.constant 0 : i32
    return %c0_i32, %c0_i32_0 : i32, i32
  }
  func.func @transform_2(%arg0: i32) -> (i32, i32) {
    %c0_i32 = arith.constant 0 : i32
    %c0_i32_0 = arith.constant 0 : i32
    %c0_i32_1 = arith.constant 0 : i32
    return %c0_i32, %c0_i32_0 : i32, i32
  }
  func.func @transform_3(%arg0: i32) -> (i32, i32) {
    %c0_i32 = arith.constant 0 : i32
    %c0_i32_0 = arith.constant 0 : i32
    return %arg0, %c0_i32 : i32, i32
  }
}

</mosaic_0001>

<llo_original>
// kernel: tpu_custom_call.1
$region0: #{tpu_custom_call.1}
  #allocation0 [shape = 'u32[]', space=smem, size = 0x4, offset = 0x4, fixed_abs, tag = 'smem constant byte address 0x4 - core index']
  #allocation1 [shape = 'u32[144,128]{1,0:T(1,128)}', space=vmem, size = 0x12000, scoped, tag = 'internal scratch']
  %s0 = inlined_call_operand.hbm [shape: bf16[8,256], index: 0, kind: input, shape index: {}]
  %s1 = inlined_call_operand.hbm [shape: bf16[256,128], index: 1, kind: input, shape index: {}]
  %s2 = inlined_call_operand.vmem [shape: f32[1,128], index: 2, kind: input, shape index: {}]
  %s3 = inlined_call_operand.hbm [shape: f32[8,128], index: 3, kind: output, shape index: {}]
  %s4 = sld [smem:[#allocation0]]
  $region30: #{tpu_custom_call.1} parent=0
    _
  %s6 = ssub.s32 1, %s4
  %s7 = scalar_select 0, %s6, %s4
  $region1: #{tpu_custom_call.1} parent=0
    #allocation2 [shape = 'u8[4096]{0}', space=vmem, size = 0x1000, scoped, tag = 'input window, operand 0, single buffered']
    #allocation3 [shape = 's32[1]{0}', space=sflag, size = 0x4, scoped, tag = 'scoped memory for tpu_custom_call.1']
    #allocation4 [shape = 's32[1]{0}', space=sflag, size = 0x4, scoped, tag = 'scoped memory for tpu_custom_call.1']
    #allocation5 [shape = 'u8[65536]{0}', space=vmem, size = 0x10000, scoped, tag = 'input window, operand 1, single buffered']
    #allocation6 [shape = 's32[1]{0}', space=sflag, size = 0x4, scoped, tag = 'scoped memory for tpu_custom_call.1']
    #allocation7 [shape = 'u8[4096]{0}', space=vmem, size = 0x1000, scoped, tag = 'output window, operand 0, single buffered']
    %8 = vsyncpa [#allocation3], 0
    %9 = vsyncpa [#allocation6], 0
    %10 = vsyncpa [#allocation4], 0
    // Predicated region
    $region2: #{tpu_custom_call.1} parent=1 // pred_check
      _
    $region3: #{tpu_custom_call.1} parent=1 // pred_check_branch
      %12 = sbr.rel (0) target = $region5
    $region4: #{tpu_custom_call.1} parent=1 // pred_region
      %s14 = ssub.s32 128, 128
      %15 = vsyncadd [#allocation3], %s14
      %s17 = sshll.u32 [#allocation2], 4
      %s18 = int_to_ptr.vmem [resolvable:$true] %s17
      %20 = dma.hbm_to_vmem [thread:$0]  %s0, 128, %s18, [#allocation3]
    $region5: #{tpu_custom_call.1} parent=1 // pred_fallthru
      _
    // Predicated region
    $region6: #{tpu_custom_call.1} parent=1 // pred_check
      _
    $region7: #{tpu_custom_call.1} parent=1 // pred_check_branch
      %22 = sbr.rel (0) target = $region9
    $region8: #{tpu_custom_call.1} parent=1 // pred_region
      %s24 = ssub.s32 2048, 2048
      %25 = vsyncadd [#allocation6], %s24
      %s26 = sshll.u32 [#allocation5], 4
      %s27 = int_to_ptr.vmem [resolvable:$true] %s26
      %32 = dma.hbm_to_vmem [thread:$0]  %s1, 2048, %s27, [#allocation6], 64, 64, 4
    $region9: #{tpu_custom_call.1} parent=1 // pred_fallthru
      _
    // Predicated region
    $region10: #{tpu_custom_call.1} parent=1 // pred_check
      _
    $region11: #{tpu_custom_call.1} parent=1 // pred_check_branch
      %34 = sbr.rel (0) target = $region13
    $region12: #{tpu_custom_call.1} parent=1 // pred_region
      _
    $region13: #{tpu_custom_call.1} parent=1 // pred_fallthru
      _
    // Predicated region
    $region14: #{tpu_custom_call.1} parent=1 // pred_check
      _
    $region15: #{tpu_custom_call.1} parent=1 // pred_check_branch
      %36 = sbr.rel (0) target = $region17
    $region16: #{tpu_custom_call.1} parent=1 // pred_region
      %37 = dma.done [#allocation3], 128
    $region17: #{tpu_custom_call.1} parent=1 // pred_fallthru
      _
    // Predicated region
    $region18: #{tpu_custom_call.1} parent=1 // pred_check
      _
    $region19: #{tpu_custom_call.1} parent=1 // pred_check_branch
      %39 = sbr.rel (0) target = $region21
    $region20: #{tpu_custom_call.1} parent=1 // pred_region
      %40 = dma.done [#allocation6], 2048
    $region21: #{tpu_custom_call.1} parent=1 // pred_fallthru
      _
    %v42 = vld [vmem:[#allocation2] sm:$0xff]
    %v43 = vld [vmem:[#allocation5] sm:$0xf]
    %v44 = vld [vmem:[#allocation5 + $0x4] sm:$0xf]
    %v45 = vld [vmem:[#allocation5 + $0x8] sm:$0xf]
    %v46 = vld [vmem:[#allocation5 + $0xc] sm:$0xf]
    %v47 = vld [vmem:[#allocation5 + $0x10] sm:$0xf]
    %v48 = vld [vmem:[#allocation5 + $0x14] sm:$0xf]
    %v49 = vld [vmem:[#allocation5 + $0x18] sm:$0xf]
    %v50 = vld [vmem:[#allocation5 + $0x1c] sm:$0xf]
    %v51 = vld [vmem:[#allocation5 + $0x20] sm:$0xf]
    %v52 = vld [vmem:[#allocation5 + $0x24] sm:$0xf]
    %v53 = vld [vmem:[#allocation5 + $0x28] sm:$0xf]
    %v54 = vld [vmem:[#allocation5 + $0x2c] sm:$0xf]
    %v55 = vld [vmem:[#allocation5 + $0x30] sm:$0xf]
    %v56 = vld [vmem:[#allocation5 + $0x34] sm:$0xf]
    %v57 = vld [vmem:[#allocation5 + $0x38] sm:$0xf]
    %v58 = vld [vmem:[#allocation5 + $0x3c] sm:$0xf]
    %v59 = vld [vmem:[#allocation5 + $0x40] sm:$0xf]
    %v60 = vld [vmem:[#allocation5 + $0x44] sm:$0xf]
    %v61 = vld [vmem:[#allocation5 + $0x48] sm:$0xf]
    %v62 = vld [vmem:[#allocation5 + $0x4c] sm:$0xf]
    %v63 = vld [vmem:[#allocation5 + $0x50] sm:$0xf]
    %v64 = vld [vmem:[#allocation5 + $0x54] sm:$0xf]
    %v65 = vld [vmem:[#allocation5 + $0x58] sm:$0xf]
    %v66 = vld [vmem:[#allocation5 + $0x5c] sm:$0xf]
    %v67 = vld [vmem:[#allocation5 + $0x60] sm:$0xf]
    %v68 = vld [vmem:[#allocation5 + $0x64] sm:$0xf]
    %v69 = vld [vmem:[#allocation5 + $0x68] sm:$0xf]
    %v70 = vld [vmem:[#allocation5 + $0x6c] sm:$0xf]
    %v71 = vld [vmem:[#allocation5 + $0x70] sm:$0xf]
    %v72 = vld [vmem:[#allocation5 + $0x74] sm:$0xf]
    %v73 = vld [vmem:[#allocation5 + $0x78] sm:$0xf]
    %v74 = vld [vmem:[#allocation5 + $0x7c] sm:$0xf]
    %v75 = vld [vmem:[%s2] sm:$0x1]
    %v77 = vlaneseq
    %v78 = vshrl.u32 %v77, 7
    %v79 = vsub.s32 0, %v78
    %v80 = vrot.slane %v75, %v79
    %v83 = vunpack.c.l.b16 %v42
    %v84 = vunpack.c.h.b16 %v42
    %v85 = vpack.c.b16 %v83, %v83
    %v86 = vpack.c.b16 %v84, %v84
    %v121 = vunpack.c.l.b16 %v43
    %v122 = vunpack.c.l.b16 %v44
    %v123 = vunpack.c.l.b16 %v45
    %v124 = vunpack.c.l.b16 %v46
    %v125 = vunpack.c.l.b16 %v47
    %v126 = vunpack.c.l.b16 %v48
    %v127 = vunpack.c.l.b16 %v49
    %v128 = vunpack.c.l.b16 %v50
    %v129 = vunpack.c.l.b16 %v51
    %v130 = vunpack.c.l.b16 %v52
    %v131 = vunpack.c.l.b16 %v53
    %v132 = vunpack.c.l.b16 %v54
    %v133 = vunpack.c.l.b16 %v55
    %v134 = vunpack.c.l.b16 %v56
    %v135 = vunpack.c.l.b16 %v57
    %v136 = vunpack.c.l.b16 %v58
    %v137 = vunpack.c.l.b16 %v59
    %v138 = vunpack.c.l.b16 %v60
    %v139 = vunpack.c.l.b16 %v61
    %v140 = vunpack.c.l.b16 %v62
    %v141 = vunpack.c.l.b16 %v63
    %v142 = vunpack.c.l.b16 %v64
    %v143 = vunpack.c.l.b16 %v65
    %v144 = vunpack.c.l.b16 %v66
    %v145 = vunpack.c.l.b16 %v67
    %v146 = vunpack.c.l.b16 %v68
    %v147 = vunpack.c.l.b16 %v69
    %v148 = vunpack.c.l.b16 %v70
    %v149 = vunpack.c.l.b16 %v71
    %v150 = vunpack.c.l.b16 %v72
    %v151 = vunpack.c.l.b16 %v73
    %v152 = vunpack.c.l.b16 %v74
    %v153 = vpack.c.b16 %v122, %v121
    %v154 = vpack.c.b16 %v124, %v123
    %v155 = vpack.c.b16 %v126, %v125
    %v156 = vpack.c.b16 %v128, %v127
    %v157 = vpack.c.b16 %v130, %v129
    %v158 = vpack.c.b16 %v132, %v131
    %v159 = vpack.c.b16 %v134, %v133
    %v160 = vpack.c.b16 %v136, %v135
    %v161 = vpack.c.b16 %v138, %v137
    %v162 = vpack.c.b16 %v140, %v139
    %v163 = vpack.c.b16 %v142, %v141
    %v164 = vpack.c.b16 %v144, %v143
    %v165 = vpack.c.b16 %v146, %v145
    %v166 = vpack.c.b16 %v148, %v147
    %v167 = vpack.c.b16 %v150, %v149
    %v168 = vpack.c.b16 %v152, %v151
    %185 = vmatprep.subr.bf16.mxu0 0
    %186 = vmatpush1.bf16.msra.mxu0 %v160
    %187 = vmatprep.subr.bf16.mxu0 0
    %188 = vmatpush1.bf16.msra.mxu0 %v159
    %189 = vmatprep.subr.bf16.mxu0 0
    %190 = vmatpush1.bf16.msra.mxu0 %v158
    %191 = vmatprep.subr.bf16.mxu0 0
    %192 = vmatpush1.bf16.msra.mxu0 %v157
    %193 = vmatprep.subr.bf16.mxu0 0
    %194 = vmatpush1.bf16.msra.mxu0 %v156
    %195 = vmatprep.subr.bf16.mxu0 0
    %196 = vmatpush1.bf16.msra.mxu0 %v155
    %197 = vmatprep.subr.bf16.mxu0 0
    %198 = vmatpush1.bf16.msra.mxu0 %v154
    %199 = vmatprep.subr.bf16.mxu0 0
    %200 = vmatpush1.bf16.msra.mxu0 %v153
    %201 = vmatprep.subr.bf16.mxu0 0
    %202 = vmatpush2.bf16.msra.mxu0 %v168
    %203 = vmatprep.subr.bf16.mxu0 0
    %204 = vmatpush2.bf16.msra.mxu0 %v167
    %205 = vmatprep.subr.bf16.mxu0 0
    %206 = vmatpush2.bf16.msra.mxu0 %v166
    %207 = vmatprep.subr.bf16.mxu0 0
    %208 = vmatpush2.bf16.msra.mxu0 %v165
    %209 = vmatprep.subr.bf16.mxu0 0
    %210 = vmatpush2.bf16.msra.mxu0 %v164
    %211 = vmatprep.subr.bf16.mxu0 0
    %212 = vmatpush2.bf16.msra.mxu0 %v163
    %213 = vmatprep.subr.bf16.mxu0 0
    %214 = vmatpush2.bf16.msra.mxu0 %v162
    %215 = vmatprep.subr.bf16.mxu0 0
    %216 = vmatpush2.bf16.msra.mxu0 %v161
    %217 = vmatprep.mubr.bf16.mxu0 %v86
    %218 = vmatmul.mubr.bf16.gmra.mxu0 %v85
    %v219 = vpop.f32.mrf.mxu0
    %v220 = vadd.f32 %v80, %v219
    %v221 = vpop.f32.mrf.mxu0
    %v222 = vpop.f32.mrf.mxu0
    %v223 = vpop.f32.mrf.mxu0
    %224 = vdwg.mxu0
    %225 = vst [vmem:[#allocation7] sm:$0xff] %v220
    // Predicated region
    $region22: #{tpu_custom_call.1} parent=1 // pred_check
      _
    $region23: #{tpu_custom_call.1} parent=1 // pred_check_branch
      %227 = sbr.rel (0) target = $region25
    $region24: #{tpu_custom_call.1} parent=1 // pred_region
      %s229 = ssub.s32 128, 128
      %230 = vsyncadd [#allocation4], %s229
      %s232 = sshll.u32 [#allocation7], 4
      %s233 = int_to_ptr.vmem [resolvable:$true] %s232
      %235 = dma.vmem_to_hbm [thread:$0]  %s233, 128, %s3, [#allocation4]
    $region25: #{tpu_custom_call.1} parent=1 // pred_fallthru
      _
    // Predicated region
    $region26: #{tpu_custom_call.1} parent=1 // pred_check
      _
    $region27: #{tpu_custom_call.1} parent=1 // pred_check_branch
      %237 = sbr.rel (0) target = $region29
    $region28: #{tpu_custom_call.1} parent=1 // pred_region
      %238 = dma.done [#allocation4], 128
    $region29: #{tpu_custom_call.1} parent=1 // pred_fallthru
      _
    %239 = vsyncpa [#allocation3], 1
    %240 = vsyncpa [#allocation6], 1
    %241 = vsyncpa [#allocation4], 1

</llo_original>
